<compile_context>
chip_gen: v7x
topology: tpu7x:2x2x1
jax: 0.10.0
libtpu: 0.0.40
codegen_flags: <defaults>
</compile_context>

<pallas_src>
import functools

import jax
import jax.numpy as jnp
from jax.experimental import pallas as pl
from jax.experimental.pallas import tpu as pltpu


def _highfreq_kernel(x_ref, o_ref, *, num_freqs):
    """Lane-dense elementwise hot path.

    x_ref: (bm, C) float32 block of the flattened input.
    o_ref: (1 + 2*num_freqs, bm, C) output block; each chunk written directly.
    """
    x = x_ref[...]
    o_ref[0] = x                                   # identity chunk
    for l in range(num_freqs):                     # small static loop (unrolled)
        scaled = x * jnp.float32(2.0 ** l)         # VPU (has headroom)
        o_ref[1 + 2 * l] = jnp.sin(scaled)         # EUP
        o_ref[2 + 2 * l] = jnp.cos(scaled)         # EUP
    # TODO(synk): if EUP-bound (likely only on v7x), switch octaves l>=1 to the
    # angle-doubling recurrence (s'=2sc, c'=1-2s^2); kept direct sin/cos here
    # so results match the reference exactly.


def high_freq_encoding(in_feat, num_freqs, *, block_rows=256, lane_width=512):
    """Pallas HighFreqEncoding. in_feat: (n_rays, n_points, F) float32.

    Returns (n_rays, n_points, F*(1+2*num_freqs)) ordered exactly like the
    PyTorch module: [x, sin(2^0 x), cos(2^0 x), ..., sin(2^(L-1) x), cos(2^(L-1) x)].
    """
    n_rays, n_points, f = in_feat.shape
    n = n_rays * n_points
    total = n * f
    n_chunks = 1 + 2 * num_freqs
    c = lane_width                                  # lane-dense width (multiple of 128)

    # Flatten (free: contiguous) and pad only the tail up to a lane multiple.
    x_flat = in_feat.reshape(-1)
    pad = (-total) % c
    if pad:
        # Only triggers when total % lane_width != 0; typical ray batches are
        # already aligned so this copy is usually skipped.
        x_flat = jnp.pad(x_flat, (0, pad))
    m = x_flat.size // c
    x2d = x_flat.reshape(m, c)

    # Sublane block: multiple of 8 when tiling, or the full extent when small.
    bm = block_rows if m > block_rows else m
    grid_m = pl.cdiv(m, bm)                         # ragged last block handled by Pallas
                                                    # (OOB reads undefined, OOB writes dropped,
                                                    #  and those positions are discarded below)

    out = pl.pallas_call(
        functools.partial(_highfreq_kernel, num_freqs=num_freqs),
        out_shape=jax.ShapeDtypeStruct((n_chunks, m, c), in_feat.dtype),
        grid_spec=pltpu.PrefetchScalarGridSpec(
            num_scalar_prefetch=0,
            grid=(grid_m,),
            in_specs=[pl.BlockSpec((bm, c), lambda i: (i, 0))],
            out_specs=pl.BlockSpec((n_chunks, bm, c), lambda i: (0, i, 0)),
        ),
        compiler_params=pltpu.CompilerParams(
            dimension_semantics=("parallel",)),
    )(x2d)

    # Chunked (1+2L, M*C) -> drop tail pad -> interleave chunks along features.
    out = out.reshape(n_chunks, m * c)[:, :total].reshape(n_chunks, n, f)
    out = jnp.transpose(out, (1, 0, 2)).reshape(n_rays, n_points, n_chunks * f)
    # TODO(synk): fusing the consumer (first NeRF MLP matmul) into this kernel
    # would avoid materializing the (1+2L)-expanded tensor in HBM entirely.
    return out


def high_freq_encoding_ref(in_feat, num_freqs):
    """Pure-JAX reference mirroring the PyTorch forward exactly."""
    n_rays, n_points, f = in_feat.shape
    x = in_feat.reshape(-1, f)
    # encod_coeff = [2^0, 2^0, 2^1, 2^1, ..., 2^(L-1), 2^(L-1)]
    coeff = jnp.repeat(2.0 ** jnp.arange(num_freqs, dtype=jnp.float32), 2)
    enc = x[:, :, None] * coeff[None, None, :]          # (N, F, 2L)
    even = jnp.sin(enc[:, :, 0::2])
    odd = jnp.cos(enc[:, :, 1::2])
    enc = jnp.stack([even, odd], axis=-1).reshape(enc.shape)   # re-interleave
    enc = jnp.transpose(enc, (0, 2, 1)).reshape(x.shape[0], -1)
    out = jnp.concatenate([x, enc], axis=1)
    return out.reshape(n_rays, n_points, -1)


if __name__ == "__main__":
    num_freqs = 4          # L  -> output feature dim = F*(1+2L) = 3*9 = 27

    # Small shape consistent with the module's forward: (n_rays, n_points, 3).
    n_rays, n_points, feat = 2, 8, 3
    key = jax.random.PRNGKey(0)
    in_feat = jax.random.normal(key, (n_rays, n_points, feat), dtype=jnp.float32)

    out = jax.block_until_ready(high_freq_encoding(in_feat, num_freqs))
    ref = high_freq_encoding_ref(in_feat, num_freqs)
    assert out.shape == (n_rays, n_points, feat * (1 + 2 * num_freqs)), out.shape
    assert jnp.allclose(out, ref, atol=1e-5, rtol=1e-5), "mismatch vs reference (small)"

    # Second check exercising tail padding, a multi-step grid and a ragged
    # last block (132000 elems -> M=258 rows of 512 lanes, grid = 2 steps).
    in_feat2 = jax.random.normal(jax.random.PRNGKey(1), (2, 22000, 3),
                                 dtype=jnp.float32)
    out2 = jax.block_until_ready(high_freq_encoding(in_feat2, num_freqs))
    ref2 = high_freq_encoding_ref(in_feat2, num_freqs)
    assert jnp.allclose(out2, ref2, atol=1e-5, rtol=1e-5), "mismatch vs reference (large)"

    print("KERNEL_OK")
</pallas_src>

<mosaic_0001>
module attributes {stable_mosaic.version = 11 : i64} {
  func.func @_highfreq_kernel(%arg0: i32, %arg1: memref<1x512xf32, #tpu.memory_space<vmem>>, %arg2: memref<9x1x512xf32, #tpu.memory_space<vmem>>) attributes {dimension_semantics = [#tpu.dimension_semantics<parallel>], iteration_bounds = array<i64: 1>, scalar_prefetch = 0 : i64, scratch_operands = 0 : i64, tpu.core_type = #tpu.core_type<tc>, window_params = [{transform_indices = @transform_0, window_bounds = array<i64: 1, 512>}, {transform_indices = @transform_1, window_bounds = array<i64: 9, 1, 512>}]} {
    %c0 = arith.constant 0 : index
    %c0_0 = arith.constant 0 : index
    %0 = vector.load %arg1[%c0, %c0_0] : memref<1x512xf32, #tpu.memory_space<vmem>>, vector<1x512xf32>
    %c0_1 = arith.constant 0 : index
    %c0_2 = arith.constant 0 : index
    %c0_3 = arith.constant 0 : index
    %1 = vector.load %arg2[%c0_1, %c0_2, %c0_3] : memref<9x1x512xf32, #tpu.memory_space<vmem>>, vector<1x1x512xf32>
    %2 = vector.shape_cast %1 : vector<1x1x512xf32> to vector<1x512xf32>
    %3 = vector.shape_cast %0 : vector<1x512xf32> to vector<1x1x512xf32>
    tpu.vector_store %arg2[%c0_1, %c0_2, %c0_3], %3 {strides = array<i32>} : memref<9x1x512xf32, #tpu.memory_space<vmem>>, vector<1x1x512xf32>,
    %cst = arith.constant 1.000000e+00 : f32
    %4 = vector.broadcast %cst : f32 to vector<1x512xf32>
    %5 = arith.mulf %0, %4 : vector<1x512xf32>
    %6 = math.sin %5 : vector<1x512xf32>
    %c1 = arith.constant 1 : index
    %c0_4 = arith.constant 0 : index
    %c0_5 = arith.constant 0 : index
    %7 = vector.load %arg2[%c1, %c0_4, %c0_5] : memref<9x1x512xf32, #tpu.memory_space<vmem>>, vector<1x1x512xf32>
    %8 = vector.shape_cast %7 : vector<1x1x512xf32> to vector<1x512xf32>
    %9 = vector.shape_cast %6 : vector<1x512xf32> to vector<1x1x512xf32>
    tpu.vector_store %arg2[%c1, %c0_4, %c0_5], %9 {strides = array<i32>} : memref<9x1x512xf32, #tpu.memory_space<vmem>>, vector<1x1x512xf32>,
    %10 = math.cos %5 : vector<1x512xf32>
    %c2 = arith.constant 2 : index
    %c0_6 = arith.constant 0 : index
    %c0_7 = arith.constant 0 : index
    %11 = vector.load %arg2[%c2, %c0_6, %c0_7] : memref<9x1x512xf32, #tpu.memory_space<vmem>>, vector<1x1x512xf32>
    %12 = vector.shape_cast %11 : vector<1x1x512xf32> to vector<1x512xf32>
    %13 = vector.shape_cast %10 : vector<1x512xf32> to vector<1x1x512xf32>
    tpu.vector_store %arg2[%c2, %c0_6, %c0_7], %13 {strides = array<i32>} : memref<9x1x512xf32, #tpu.memory_space<vmem>>, vector<1x1x512xf32>,
    %cst_8 = arith.constant 2.000000e+00 : f32
    %14 = vector.broadcast %cst_8 : f32 to vector<1x512xf32>
    %15 = arith.mulf %0, %14 : vector<1x512xf32>
    %16 = math.sin %15 : vector<1x512xf32>
    %c3 = arith.constant 3 : index
    %c0_9 = arith.constant 0 : index
    %c0_10 = arith.constant 0 : index
    %17 = vector.load %arg2[%c3, %c0_9, %c0_10] : memref<9x1x512xf32, #tpu.memory_space<vmem>>, vector<1x1x512xf32>
    %18 = vector.shape_cast %17 : vector<1x1x512xf32> to vector<1x512xf32>
    %19 = vector.shape_cast %16 : vector<1x512xf32> to vector<1x1x512xf32>
    tpu.vector_store %arg2[%c3, %c0_9, %c0_10], %19 {strides = array<i32>} : memref<9x1x512xf32, #tpu.memory_space<vmem>>, vector<1x1x512xf32>,
    %20 = math.cos %15 : vector<1x512xf32>
    %c4 = arith.constant 4 : index
    %c0_11 = arith.constant 0 : index
    %c0_12 = arith.constant 0 : index
    %21 = vector.load %arg2[%c4, %c0_11, %c0_12] : memref<9x1x512xf32, #tpu.memory_space<vmem>>, vector<1x1x512xf32>
    %22 = vector.shape_cast %21 : vector<1x1x512xf32> to vector<1x512xf32>
    %23 = vector.shape_cast %20 : vector<1x512xf32> to vector<1x1x512xf32>
    tpu.vector_store %arg2[%c4, %c0_11, %c0_12], %23 {strides = array<i32>} : memref<9x1x512xf32, #tpu.memory_space<vmem>>, vector<1x1x512xf32>,
    %cst_13 = arith.constant 4.000000e+00 : f32
    %24 = vector.broadcast %cst_13 : f32 to vector<1x512xf32>
    %25 = arith.mulf %0, %24 : vector<1x512xf32>
    %26 = math.sin %25 : vector<1x512xf32>
    %c5 = arith.constant 5 : index
    %c0_14 = arith.constant 0 : index
    %c0_15 = arith.constant 0 : index
    %27 = vector.load %arg2[%c5, %c0_14, %c0_15] : memref<9x1x512xf32, #tpu.memory_space<vmem>>, vector<1x1x512xf32>
    %28 = vector.shape_cast %27 : vector<1x1x512xf32> to vector<1x512xf32>
    %29 = vector.shape_cast %26 : vector<1x512xf32> to vector<1x1x512xf32>
    tpu.vector_store %arg2[%c5, %c0_14, %c0_15], %29 {strides = array<i32>} : memref<9x1x512xf32, #tpu.memory_space<vmem>>, vector<1x1x512xf32>,
    %30 = math.cos %25 : vector<1x512xf32>
    %c6 = arith.constant 6 : index
    %c0_16 = arith.constant 0 : index
    %c0_17 = arith.constant 0 : index
    %31 = vector.load %arg2[%c6, %c0_16, %c0_17] : memref<9x1x512xf32, #tpu.memory_space<vmem>>, vector<1x1x512xf32>
    %32 = vector.shape_cast %31 : vector<1x1x512xf32> to vector<1x512xf32>
    %33 = vector.shape_cast %30 : vector<1x512xf32> to vector<1x1x512xf32>
    tpu.vector_store %arg2[%c6, %c0_16, %c0_17], %33 {strides = array<i32>} : memref<9x1x512xf32, #tpu.memory_space<vmem>>, vector<1x1x512xf32>,
    %cst_18 = arith.constant 8.000000e+00 : f32
    %34 = vector.broadcast %cst_18 : f32 to vector<1x512xf32>
    %35 = arith.mulf %0, %34 : vector<1x512xf32>
    %36 = math.sin %35 : vector<1x512xf32>
    %c7 = arith.constant 7 : index
    %c0_19 = arith.constant 0 : index
    %c0_20 = arith.constant 0 : index
    %37 = vector.load %arg2[%c7, %c0_19, %c0_20] : memref<9x1x512xf32, #tpu.memory_space<vmem>>, vector<1x1x512xf32>
    %38 = vector.shape_cast %37 : vector<1x1x512xf32> to vector<1x512xf32>
    %39 = vector.shape_cast %36 : vector<1x512xf32> to vector<1x1x512xf32>
    tpu.vector_store %arg2[%c7, %c0_19, %c0_20], %39 {strides = array<i32>} : memref<9x1x512xf32, #tpu.memory_space<vmem>>, vector<1x1x512xf32>,
    %40 = math.cos %35 : vector<1x512xf32>
    %c8 = arith.constant 8 : index
    %c0_21 = arith.constant 0 : index
    %c0_22 = arith.constant 0 : index
    %41 = vector.load %arg2[%c8, %c0_21, %c0_22] : memref<9x1x512xf32, #tpu.memory_space<vmem>>, vector<1x1x512xf32>
    %42 = vector.shape_cast %41 : vector<1x1x512xf32> to vector<1x512xf32>
    %43 = vector.shape_cast %40 : vector<1x512xf32> to vector<1x1x512xf32>
    tpu.vector_store %arg2[%c8, %c0_21, %c0_22], %43 {strides = array<i32>} : memref<9x1x512xf32, #tpu.memory_space<vmem>>, vector<1x1x512xf32>,
    return
  }
  func.func @transform_0(%arg0: i32) -> (i32, i32) {
    %c0_i32 = arith.constant 0 : i32
    %c0_i32_0 = arith.constant 0 : i32
    return %arg0, %c0_i32 : i32, i32
  }
  func.func @transform_1(%arg0: i32) -> (i32, i32, i32) {
    %c0_i32 = arith.constant 0 : i32
    %c0_i32_0 = arith.constant 0 : i32
    %c0_i32_1 = arith.constant 0 : i32
    return %c0_i32, %arg0, %c0_i32_0 : i32, i32, i32
  }
}

</mosaic_0001>

<llo_original>
// kernel: tpu_custom_call.1
$region0: #{tpu_custom_call.1}
  #allocation0 [shape = 'u32[]', space=smem, size = 0x4, offset = 0x4, fixed_abs, tag = 'smem constant byte address 0x4 - core index']
  #allocation1 [shape = 'u32[144,128]{1,0:T(1,128)}', space=vmem, size = 0x12000, scoped, tag = 'internal scratch']
  %s0 = inlined_call_operand.hbm [shape: f32[1,512], index: 0, kind: input, shape index: {}]
  %s1 = inlined_call_operand.hbm [shape: f32[9,1,512], index: 1, kind: output, shape index: {}]
  %s2 = sld [smem:[#allocation0]]
  $region18: #{tpu_custom_call.1} parent=0
    _
  %s4 = ssub.s32 1, %s2
  %s5 = scalar_select 0, %s4, %s2
  $region1: #{tpu_custom_call.1} parent=0
    #allocation2 [shape = 'u8[2048]{0}', space=vmem, size = 0x800, scoped, tag = 'input window, operand 0, single buffered']
    #allocation3 [shape = 's32[1]{0}', space=sflag, size = 0x4, scoped, tag = 'scoped memory for tpu_custom_call.1']
    #allocation4 [shape = 's32[1]{0}', space=sflag, size = 0x4, scoped, tag = 'scoped memory for tpu_custom_call.1']
    #allocation5 [shape = 'u8[18432]{0}', space=vmem, size = 0x4800, scoped, tag = 'output window, operand 0, single buffered']
    %6 = vsyncpa [#allocation3], 0
    %7 = vsyncpa [#allocation4], 0
    // Predicated region
    $region2: #{tpu_custom_call.1} parent=1 // pred_check
      _
    $region3: #{tpu_custom_call.1} parent=1 // pred_check_branch
      %9 = sbr.rel (0) target = $region5
    $region4: #{tpu_custom_call.1} parent=1 // pred_region
      %s11 = ssub.s32 64, 64
      %12 = vsyncadd [#allocation3], %s11
      %s14 = sshll.u32 [#allocation2], 4
      %s15 = int_to_ptr.vmem [resolvable:$true] %s14
      %17 = dma.hbm_to_vmem [thread:$0]  %s0, 64, %s15, [#allocation3]
    $region5: #{tpu_custom_call.1} parent=1 // pred_fallthru
      _
    // Predicated region
    $region6: #{tpu_custom_call.1} parent=1 // pred_check
      _
    $region7: #{tpu_custom_call.1} parent=1 // pred_check_branch
      %19 = sbr.rel (0) target = $region9
    $region8: #{tpu_custom_call.1} parent=1 // pred_region
      %20 = dma.done [#allocation3], 64
    $region9: #{tpu_custom_call.1} parent=1 // pred_fallthru
      _
    %v21 = vld [vmem:[#allocation2] sm:$0xf]
    %v22 = vlaneseq
    %vm23 = vcmp.ge.s32.totalorder %v22, 0
    %vm24 = vcmp.lt.s32.totalorder %v22, 512
    %vm25 = vmand %vm23, %vm24
    %26 = vst.msk [vmem:[#allocation5] sm:$0xf] %vm25, %v21
    %v27 = vand.u32 2147483647, %v21
    %vm28 = vcmp.le.f32.partialorder %v27, 0.7853982
    %vm29 = vcmp.lt.s32.totalorder %v21, 0
    %v30 = vand.u32 %v21, 2139095040
    %v31 = vshrl.u32 %v30, 23
    %v32 = vsub.s32 %v31, 127
    %v33 = vand.u32 2147483647, %v21
    %v34 = vand.u32 %v33, 8388607
    %v35 = vor.u32 %v34, 8388608
    %v36 = vsub.s32 0, %v35
    %v37 = vadd.s32 %v32, 1
    %vm38 = vcmp.gt.s32.totalorder %v37, 0
    %v39 = vsel %vm38, %v37, 0
    %v40 = vshrl.u32 %v39, 5
    %v41 = vand.u32 %v39, 31
    %v42 = vsub.s32 32, %v41
    %v43 = vshrl.u32 683565275, %v42
    %v44 = vshll.u32 683565275, %v41
    %v45 = vshrl.u32 2475754826, %v42
    %v46 = vor.u32 %v44, %v45
    %v47 = vshll.u32 2475754826, %v41
    %v48 = vshrl.u32 2131351028, %v42
    %v49 = vor.u32 %v47, %v48
    %v50 = vshll.u32 2131351028, %v41
    %v51 = vshrl.u32 2102212464, %v42
    %v52 = vor.u32 %v50, %v51
    %v53 = vshll.u32 2102212464, %v41
    %v54 = vshrl.u32 920167782, %v42
    %v55 = vor.u32 %v53, %v54
    %v56 = vshll.u32 920167782, %v41
    %v57 = vshrl.u32 1326507024, %v42
    %v58 = vor.u32 %v56, %v57
    %vm59 = vcmp.lt.s32.totalorder %v40, 1
    %vm60 = vcmp.lt.s32.totalorder %v40, 2
    %vm61 = vcmp.lt.s32.totalorder %v40, 3
    %vm62 = vcmp.lt.s32.totalorder %v40, 4
    %v63 = vsel %vm59, %v43, %v46
    %v64 = vsel %vm62, %v52, 2102212464
    %v65 = vsel %vm61, %v49, %v64
    %v66 = vsel %vm60, %v63, %v65
    %v67 = vsel %vm59, %v46, %v49
    %v68 = vsel %vm62, %v55, 920167782
    %v69 = vsel %vm61, %v52, %v68
    %v70 = vsel %vm60, %v67, %v69
    %v71 = vsel %vm59, %v49, %v52
    %v72 = vsel %vm62, %v58, 1326507024
    %v73 = vsel %vm61, %v55, %v72
    %v74 = vsel %vm60, %v71, %v73
    %v75 = vshll.u32 %v35, 8
    %v76 = vmul.u32.u64.compose %v75, %v74
    %v77 = vextract.low.u32 %v76
    %v78 = vextract.high.u32 %v76
    %v79 = vmul.u32.u64.compose %v75, %v70
    %v80 = vextract.low.u32 %v79
    %v81 = vextract.high.u32 %v79
    %v82 = vmul.u32 %v75, %v66
    %v83 = vadd.s32 %v78, %v80
    %vm84 = vc.u32 %v78, %v80
    %v85 = vadd.s32 %v81, 1
    %v86 = vsel %vm84, %v85, %v81
    %v87 = vadd.s32 %v82, %v86
    %v88 = vadd.s32 %v87, 536870912
    %v89 = vshrl.u32 %v88, 30
    %v90 = vshll.u32 %v89, 30
    %v91 = vsub.s32 %v87, %v90
    %vm92 = vcmp.lt.s32.totalorder %v91, 0
    %v93 = vsub.s32 0, %v91
    %v94 = vsel %vm92, %v93, %v91
    %v95 = vclz %v94
    %v96 = vsub.s32 %v95, 2
    %vm97 = vcmp.gt.s32.totalorder 0, %v96
    %v98 = vsel %vm97, 0, %v96
    %v99 = vsub.s32 32, %v98
    %v100 = vshll.u32 %v91, %v98
    %v101 = vshrl.u32 %v83, %v99
    %v102 = vor.u32 %v100, %v101
    %v103 = vsub.s32 4294967266, %v98
    %v104 = vadd.s32 %v103, 127
    %v105 = vshll.u32 %v104, 23
    %v106 = vor.u32 4788187, %v105
    %v107 = vand.u32 2147483647, %v106
    %v109 = vcvt.s32.f32 %v102
    %v110 = vmul.f32 %v109, %v107
    %v111 = vxor.u32 %v110, 2147483648
    %v112 = vsel %vm29, %v111, %v110
    %v113 = vsub.s32 4, %v89
    %v114 = vsel %vm29, %v113, %v89
    %v115 = vsel %vm28, %v21, %v112
    %v116 = vsel %vm28, 0, %v114
    %v117 = vcosq.f32.pop %v115
    %v118 = vsinq.f32.pop %v115
    %vm119 = vweird.f32 %v21
    %v120 = vadd.s32 %v116, 3
    %v121 = vand.u32 %v120, 3
    %vm122 = vcmp.lt.s32.totalorder %v121, 2
    %vm123 = vcmp.eq.s32.totalorder %v121, 0
    %v124 = vxor.u32 %v118, 2147483648
    %v125 = vsel %vm123, %v117, %v124
    %vm126 = vcmp.eq.s32.totalorder %v121, 2
    %v127 = vxor.u32 %v117, 2147483648
    %v128 = vsel %vm126, %v127, %v118
    %v129 = vsel %vm122, %v125, %v128
    %v130 = vsel %vm119, nan, %v129
    %s131 = scalar_lea.vmem [#allocation5], 4
    %132 = vst.msk [vmem:[%s131] sm:$0xf] %vm25, %v130
    %v133 = vand.u32 2147483647, %v21
    %vm134 = vcmp.le.f32.partialorder %v133, 0.7853982
    %vm135 = vcmp.lt.s32.totalorder %v21, 0
    %v136 = vand.u32 %v21, 2139095040
    %v137 = vshrl.u32 %v136, 23
    %v138 = vsub.s32 %v137, 127
    %v139 = vand.u32 2147483647, %v21
    %v140 = vand.u32 %v139, 8388607
    %v141 = vor.u32 %v140, 8388608
    %v142 = vsub.s32 0, %v141
    %v143 = vadd.s32 %v138, 1
    %vm144 = vcmp.gt.s32.totalorder %v143, 0
    %v145 = vsel %vm144, %v143, 0
    %v146 = vshrl.u32 %v145, 5
    %v147 = vand.u32 %v145, 31
    %v148 = vsub.s32 32, %v147
    %v149 = vshrl.u32 683565275, %v148
    %v150 = vshll.u32 683565275, %v147
    %v151 = vshrl.u32 2475754826, %v148
    %v152 = vor.u32 %v150, %v151
    %v153 = vshll.u32 2475754826, %v147
    %v154 = vshrl.u32 2131351028, %v148
    %v155 = vor.u32 %v153, %v154
    %v156 = vshll.u32 2131351028, %v147
    %v157 = vshrl.u32 2102212464, %v148
    %v158 = vor.u32 %v156, %v157
    %v159 = vshll.u32 2102212464, %v147
    %v160 = vshrl.u32 920167782, %v148
    %v161 = vor.u32 %v159, %v160
    %v162 = vshll.u32 920167782, %v147
    %v163 = vshrl.u32 1326507024, %v148
    %v164 = vor.u32 %v162, %v163
    %vm165 = vcmp.lt.s32.totalorder %v146, 1
    %vm166 = vcmp.lt.s32.totalorder %v146, 2
    %vm167 = vcmp.lt.s32.totalorder %v146, 3
    %vm168 = vcmp.lt.s32.totalorder %v146, 4
    %v169 = vsel %vm165, %v149, %v152
    %v170 = vsel %vm168, %v158, 2102212464
    %v171 = vsel %vm167, %v155, %v170
    %v172 = vsel %vm166, %v169, %v171
    %v173 = vsel %vm165, %v152, %v155
    %v174 = vsel %vm168, %v161, 920167782
    %v175 = vsel %vm167, %v158, %v174
    %v176 = vsel %vm166, %v173, %v175
    %v177 = vsel %vm165, %v155, %v158
    %v178 = vsel %vm168, %v164, 1326507024
    %v179 = vsel %vm167, %v161, %v178
    %v180 = vsel %vm166, %v177, %v179
    %v181 = vshll.u32 %v141, 8
    %v182 = vmul.u32.u64.compose %v181, %v180
    %v183 = vextract.low.u32 %v182
    %v184 = vextract.high.u32 %v182
    %v185 = vmul.u32.u64.compose %v181, %v176
    %v186 = vextract.low.u32 %v185
    %v187 = vextract.high.u32 %v185
    %v188 = vmul.u32 %v181, %v172
    %v189 = vadd.s32 %v184, %v186
    %vm190 = vc.u32 %v184, %v186
    %v191 = vadd.s32 %v187, 1
    %v192 = vsel %vm190, %v191, %v187
    %v193 = vadd.s32 %v188, %v192
    %v194 = vadd.s32 %v193, 536870912
    %v195 = vshrl.u32 %v194, 30
    %v196 = vshll.u32 %v195, 30
    %v197 = vsub.s32 %v193, %v196
    %vm198 = vcmp.lt.s32.totalorder %v197, 0
    %v199 = vsub.s32 0, %v197
    %v200 = vsel %vm198, %v199, %v197
    %v201 = vclz %v200
    %v202 = vsub.s32 %v201, 2
    %vm203 = vcmp.gt.s32.totalorder 0, %v202
    %v204 = vsel %vm203, 0, %v202
    %v205 = vsub.s32 32, %v204
    %v206 = vshll.u32 %v197, %v204
    %v207 = vshrl.u32 %v189, %v205
    %v208 = vor.u32 %v206, %v207
    %v209 = vsub.s32 4294967266, %v204
    %v210 = vadd.s32 %v209, 127
    %v211 = vshll.u32 %v210, 23
    %v212 = vor.u32 4788187, %v211
    %v213 = vand.u32 2147483647, %v212
    %v215 = vcvt.s32.f32 %v208
    %v216 = vmul.f32 %v215, %v213
    %v217 = vxor.u32 %v216, 2147483648
    %v218 = vsel %vm135, %v217, %v216
    %v219 = vsub.s32 4, %v195
    %v220 = vsel %vm135, %v219, %v195
    %v221 = vsel %vm134, %v21, %v218
    %v222 = vsel %vm134, 0, %v220
    %v223 = vcosq.f32.pop %v221
    %v224 = vsinq.f32.pop %v221
    %vm225 = vweird.f32 %v21
    %v226 = vand.u32 %v222, 3
    %vm227 = vcmp.lt.s32.totalorder %v226, 2
    %vm228 = vcmp.eq.s32.totalorder %v226, 0
    %v229 = vxor.u32 %v224, 2147483648
    %v230 = vsel %vm228, %v223, %v229
    %vm231 = vcmp.eq.s32.totalorder %v226, 2
    %v232 = vxor.u32 %v223, 2147483648
    %v233 = vsel %vm231, %v232, %v224
    %v234 = vsel %vm227, %v230, %v233
    %v235 = vsel %vm225, nan, %v234
    %s236 = scalar_lea.vmem [#allocation5], 8
    %237 = vst.msk [vmem:[%s236] sm:$0xf] %vm25, %v235
    %v238 = vmul.f32 %v21, 2.0
    %v239 = vand.u32 2147483647, %v238
    %vm240 = vcmp.le.f32.partialorder %v239, 0.7853982
    %vm241 = vcmp.lt.s32.totalorder %v238, 0
    %v242 = vand.u32 %v238, 2139095040
    %v243 = vshrl.u32 %v242, 23
    %v244 = vsub.s32 %v243, 127
    %v245 = vand.u32 2147483647, %v238
    %v246 = vand.u32 %v245, 8388607
    %v247 = vor.u32 %v246, 8388608
    %v248 = vsub.s32 0, %v247
    %v249 = vadd.s32 %v244, 1
    %vm250 = vcmp.gt.s32.totalorder %v249, 0
    %v251 = vsel %vm250, %v249, 0
    %v252 = vshrl.u32 %v251, 5
    %v253 = vand.u32 %v251, 31
    %v254 = vsub.s32 32, %v253
    %v255 = vshrl.u32 683565275, %v254
    %v256 = vshll.u32 683565275, %v253
    %v257 = vshrl.u32 2475754826, %v254
    %v258 = vor.u32 %v256, %v257
    %v259 = vshll.u32 2475754826, %v253
    %v260 = vshrl.u32 2131351028, %v254
    %v261 = vor.u32 %v259, %v260
    %v262 = vshll.u32 2131351028, %v253
    %v263 = vshrl.u32 2102212464, %v254
    %v264 = vor.u32 %v262, %v263
    %v265 = vshll.u32 2102212464, %v253
    %v266 = vshrl.u32 920167782, %v254
    %v267 = vor.u32 %v265, %v266
    %v268 = vshll.u32 920167782, %v253
    %v269 = vshrl.u32 1326507024, %v254
    %v270 = vor.u32 %v268, %v269
    %vm271 = vcmp.lt.s32.totalorder %v252, 1
    %vm272 = vcmp.lt.s32.totalorder %v252, 2
    %vm273 = vcmp.lt.s32.totalorder %v252, 3
    %vm274 = vcmp.lt.s32.totalorder %v252, 4
    %v275 = vsel %vm271, %v255, %v258
    %v276 = vsel %vm274, %v264, 2102212464
    %v277 = vsel %vm273, %v261, %v276
    %v278 = vsel %vm272, %v275, %v277
    %v279 = vsel %vm271, %v258, %v261
    %v280 = vsel %vm274, %v267, 920167782
    %v281 = vsel %vm273, %v264, %v280
    %v282 = vsel %vm272, %v279, %v281
    %v283 = vsel %vm271, %v261, %v264
    %v284 = vsel %vm274, %v270, 1326507024
    %v285 = vsel %vm273, %v267, %v284
    %v286 = vsel %vm272, %v283, %v285
    %v287 = vshll.u32 %v247, 8
    %v288 = vmul.u32.u64.compose %v287, %v286
    %v289 = vextract.low.u32 %v288
    %v290 = vextract.high.u32 %v288
    %v291 = vmul.u32.u64.compose %v287, %v282
    %v292 = vextract.low.u32 %v291
    %v293 = vextract.high.u32 %v291
    %v294 = vmul.u32 %v287, %v278
    %v295 = vadd.s32 %v290, %v292
    %vm296 = vc.u32 %v290, %v292
    %v297 = vadd.s32 %v293, 1
    %v298 = vsel %vm296, %v297, %v293
    %v299 = vadd.s32 %v294, %v298
    %v300 = vadd.s32 %v299, 536870912
    %v301 = vshrl.u32 %v300, 30
    %v302 = vshll.u32 %v301, 30
    %v303 = vsub.s32 %v299, %v302
    %vm304 = vcmp.lt.s32.totalorder %v303, 0
    %v305 = vsub.s32 0, %v303
    %v306 = vsel %vm304, %v305, %v303
    %v307 = vclz %v306
    %v308 = vsub.s32 %v307, 2
    %vm309 = vcmp.gt.s32.totalorder 0, %v308
    %v310 = vsel %vm309, 0, %v308
    %v311 = vsub.s32 32, %v310
    %v312 = vshll.u32 %v303, %v310
    %v313 = vshrl.u32 %v295, %v311
    %v314 = vor.u32 %v312, %v313
    %v315 = vsub.s32 4294967266, %v310
    %v316 = vadd.s32 %v315, 127
    %v317 = vshll.u32 %v316, 23
    %v318 = vor.u32 4788187, %v317
    %v319 = vand.u32 2147483647, %v318
    %v321 = vcvt.s32.f32 %v314
    %v322 = vmul.f32 %v321, %v319
    %v323 = vxor.u32 %v322, 2147483648
    %v324 = vsel %vm241, %v323, %v322
    %v325 = vsub.s32 4, %v301
    %v326 = vsel %vm241, %v325, %v301
    %v327 = vsel %vm240, %v238, %v324
    %v328 = vsel %vm240, 0, %v326
    %v329 = vcosq.f32.pop %v327
    %v330 = vsinq.f32.pop %v327
    %vm331 = vweird.f32 %v238
    %v332 = vadd.s32 %v328, 3
    %v333 = vand.u32 %v332, 3
    %vm334 = vcmp.lt.s32.totalorder %v333, 2
    %vm335 = vcmp.eq.s32.totalorder %v333, 0
    %v336 = vxor.u32 %v330, 2147483648
    %v337 = vsel %vm335, %v329, %v336
    %vm338 = vcmp.eq.s32.totalorder %v333, 2
    %v339 = vxor.u32 %v329, 2147483648
    %v340 = vsel %vm338, %v339, %v330
    %v341 = vsel %vm334, %v337, %v340
    %v342 = vsel %vm331, nan, %v341
    %s343 = scalar_lea.vmem [#allocation5], 12
    %344 = vst.msk [vmem:[%s343] sm:$0xf] %vm25, %v342
    %v345 = vand.u32 2147483647, %v238
    %vm346 = vcmp.le.f32.partialorder %v345, 0.7853982
    %vm347 = vcmp.lt.s32.totalorder %v238, 0
    %v348 = vand.u32 %v238, 2139095040
    %v349 = vshrl.u32 %v348, 23
    %v350 = vsub.s32 %v349, 127
    %v351 = vand.u32 2147483647, %v238
    %v352 = vand.u32 %v351, 8388607
    %v353 = vor.u32 %v352, 8388608
    %v354 = vsub.s32 0, %v353
    %v355 = vadd.s32 %v350, 1
    %vm356 = vcmp.gt.s32.totalorder %v355, 0
    %v357 = vsel %vm356, %v355, 0
    %v358 = vshrl.u32 %v357, 5
    %v359 = vand.u32 %v357, 31
    %v360 = vsub.s32 32, %v359
    %v361 = vshrl.u32 683565275, %v360
    %v362 = vshll.u32 683565275, %v359
    %v363 = vshrl.u32 2475754826, %v360
    %v364 = vor.u32 %v362, %v363
    %v365 = vshll.u32 2475754826, %v359
    %v366 = vshrl.u32 2131351028, %v360
    %v367 = vor.u32 %v365, %v366
    %v368 = vshll.u32 2131351028, %v359
    %v369 = vshrl.u32 2102212464, %v360
    %v370 = vor.u32 %v368, %v369
    %v371 = vshll.u32 2102212464, %v359
    %v372 = vshrl.u32 920167782, %v360
    %v373 = vor.u32 %v371, %v372
    %v374 = vshll.u32 920167782, %v359
    %v375 = vshrl.u32 1326507024, %v360
    %v376 = vor.u32 %v374, %v375
    %vm377 = vcmp.lt.s32.totalorder %v358, 1
    %vm378 = vcmp.lt.s32.totalorder %v358, 2
    %vm379 = vcmp.lt.s32.totalorder %v358, 3
    %vm380 = vcmp.lt.s32.totalorder %v358, 4
    %v381 = vsel %vm377, %v361, %v364
    %v382 = vsel %vm380, %v370, 2102212464
    %v383 = vsel %vm379, %v367, %v382
    %v384 = vsel %vm378, %v381, %v383
    %v385 = vsel %vm377, %v364, %v367
    %v386 = vsel %vm380, %v373, 920167782
    %v387 = vsel %vm379, %v370, %v386
    %v388 = vsel %vm378, %v385, %v387
    %v389 = vsel %vm377, %v367, %v370
    %v390 = vsel %vm380, %v376, 1326507024
    %v391 = vsel %vm379, %v373, %v390
    %v392 = vsel %vm378, %v389, %v391
    %v393 = vshll.u32 %v353, 8
    %v394 = vmul.u32.u64.compose %v393, %v392
    %v395 = vextract.low.u32 %v394
    %v396 = vextract.high.u32 %v394
    %v397 = vmul.u32.u64.compose %v393, %v388
    %v398 = vextract.low.u32 %v397
    %v399 = vextract.high.u32 %v397
    %v400 = vmul.u32 %v393, %v384
    %v401 = vadd.s32 %v396, %v398
    %vm402 = vc.u32 %v396, %v398
    %v403 = vadd.s32 %v399, 1
    %v404 = vsel %vm402, %v403, %v399
    %v405 = vadd.s32 %v400, %v404
    %v406 = vadd.s32 %v405, 536870912
    %v407 = vshrl.u32 %v406, 30
    %v408 = vshll.u32 %v407, 30
    %v409 = vsub.s32 %v405, %v408
    %vm410 = vcmp.lt.s32.totalorder %v409, 0
    %v411 = vsub.s32 0, %v409
    %v412 = vsel %vm410, %v411, %v409
    %v413 = vclz %v412
    %v414 = vsub.s32 %v413, 2
    %vm415 = vcmp.gt.s32.totalorder 0, %v414
    %v416 = vsel %vm415, 0, %v414
    %v417 = vsub.s32 32, %v416
    %v418 = vshll.u32 %v409, %v416
    %v419 = vshrl.u32 %v401, %v417
    %v420 = vor.u32 %v418, %v419
    %v421 = vsub.s32 4294967266, %v416
    %v422 = vadd.s32 %v421, 127
    %v423 = vshll.u32 %v422, 23
    %v424 = vor.u32 4788187, %v423
    %v425 = vand.u32 2147483647, %v424
    %v427 = vcvt.s32.f32 %v420
    %v428 = vmul.f32 %v427, %v425
    %v429 = vxor.u32 %v428, 2147483648
    %v430 = vsel %vm347, %v429, %v428
    %v431 = vsub.s32 4, %v407
    %v432 = vsel %vm347, %v431, %v407
    %v433 = vsel %vm346, %v238, %v430
    %v434 = vsel %vm346, 0, %v432
    %v435 = vcosq.f32.pop %v433
    %v436 = vsinq.f32.pop %v433
    %vm437 = vweird.f32 %v238
    %v438 = vand.u32 %v434, 3
    %vm439 = vcmp.lt.s32.totalorder %v438, 2
    %vm440 = vcmp.eq.s32.totalorder %v438, 0
    %v441 = vxor.u32 %v436, 2147483648
    %v442 = vsel %vm440, %v435, %v441
    %vm443 = vcmp.eq.s32.totalorder %v438, 2
    %v444 = vxor.u32 %v435, 2147483648
    %v445 = vsel %vm443, %v444, %v436
    %v446 = vsel %vm439, %v442, %v445
    %v447 = vsel %vm437, nan, %v446
    %s448 = scalar_lea.vmem [#allocation5], 16
    %449 = vst.msk [vmem:[%s448] sm:$0xf] %vm25, %v447
    %v450 = vmul.f32 %v21, 4.0
    %v451 = vand.u32 2147483647, %v450
    %vm452 = vcmp.le.f32.partialorder %v451, 0.7853982
    %vm453 = vcmp.lt.s32.totalorder %v450, 0
    %v454 = vand.u32 %v450, 2139095040
    %v455 = vshrl.u32 %v454, 23
    %v456 = vsub.s32 %v455, 127
    %v457 = vand.u32 2147483647, %v450
    %v458 = vand.u32 %v457, 8388607
    %v459 = vor.u32 %v458, 8388608
    %v460 = vsub.s32 0, %v459
    %v461 = vadd.s32 %v456, 1
    %vm462 = vcmp.gt.s32.totalorder %v461, 0
    %v463 = vsel %vm462, %v461, 0
    %v464 = vshrl.u32 %v463, 5
    %v465 = vand.u32 %v463, 31
    %v466 = vsub.s32 32, %v465
    %v467 = vshrl.u32 683565275, %v466
    %v468 = vshll.u32 683565275, %v465
    %v469 = vshrl.u32 2475754826, %v466
    %v470 = vor.u32 %v468, %v469
    %v471 = vshll.u32 2475754826, %v465
    %v472 = vshrl.u32 2131351028, %v466
    %v473 = vor.u32 %v471, %v472
    %v474 = vshll.u32 2131351028, %v465
    %v475 = vshrl.u32 2102212464, %v466
    %v476 = vor.u32 %v474, %v475
    %v477 = vshll.u32 2102212464, %v465
    %v478 = vshrl.u32 920167782, %v466
    %v479 = vor.u32 %v477, %v478
    %v480 = vshll.u32 920167782, %v465
    %v481 = vshrl.u32 1326507024, %v466
    %v482 = vor.u32 %v480, %v481
    %vm483 = vcmp.lt.s32.totalorder %v464, 1
    %vm484 = vcmp.lt.s32.totalorder %v464, 2
    %vm485 = vcmp.lt.s32.totalorder %v464, 3
    %vm486 = vcmp.lt.s32.totalorder %v464, 4
    %v487 = vsel %vm483, %v467, %v470
    %v488 = vsel %vm486, %v476, 2102212464
    %v489 = vsel %vm485, %v473, %v488
    %v490 = vsel %vm484, %v487, %v489
    %v491 = vsel %vm483, %v470, %v473
    %v492 = vsel %vm486, %v479, 920167782
    %v493 = vsel %vm485, %v476, %v492
    %v494 = vsel %vm484, %v491, %v493
    %v495 = vsel %vm483, %v473, %v476
    %v496 = vsel %vm486, %v482, 1326507024
    %v497 = vsel %vm485, %v479, %v496
    %v498 = vsel %vm484, %v495, %v497
    %v499 = vshll.u32 %v459, 8
    %v500 = vmul.u32.u64.compose %v499, %v498
    %v501 = vextract.low.u32 %v500
    %v502 = vextract.high.u32 %v500
    %v503 = vmul.u32.u64.compose %v499, %v494
    %v504 = vextract.low.u32 %v503
    %v505 = vextract.high.u32 %v503
    %v506 = vmul.u32 %v499, %v490
    %v507 = vadd.s32 %v502, %v504
    %vm508 = vc.u32 %v502, %v504
    %v509 = vadd.s32 %v505, 1
    %v510 = vsel %vm508, %v509, %v505
    %v511 = vadd.s32 %v506, %v510
    %v512 = vadd.s32 %v511, 536870912
    %v513 = vshrl.u32 %v512, 30
    %v514 = vshll.u32 %v513, 30
    %v515 = vsub.s32 %v511, %v514
    %vm516 = vcmp.lt.s32.totalorder %v515, 0
    %v517 = vsub.s32 0, %v515
    %v518 = vsel %vm516, %v517, %v515
    %v519 = vclz %v518
    %v520 = vsub.s32 %v519, 2
    %vm521 = vcmp.gt.s32.totalorder 0, %v520
    %v522 = vsel %vm521, 0, %v520
    %v523 = vsub.s32 32, %v522
    %v524 = vshll.u32 %v515, %v522
    %v525 = vshrl.u32 %v507, %v523
    %v526 = vor.u32 %v524, %v525
    %v527 = vsub.s32 4294967266, %v522
    %v528 = vadd.s32 %v527, 127
    %v529 = vshll.u32 %v528, 23
    %v530 = vor.u32 4788187, %v529
    %v531 = vand.u32 2147483647, %v530
    %v533 = vcvt.s32.f32 %v526
    %v534 = vmul.f32 %v533, %v531
    %v535 = vxor.u32 %v534, 2147483648
    %v536 = vsel %vm453, %v535, %v534
    %v537 = vsub.s32 4, %v513
    %v538 = vsel %vm453, %v537, %v513
    %v539 = vsel %vm452, %v450, %v536
    %v540 = vsel %vm452, 0, %v538
    %v541 = vcosq.f32.pop %v539
    %v542 = vsinq.f32.pop %v539
    %vm543 = vweird.f32 %v450
    %v544 = vadd.s32 %v540, 3
    %v545 = vand.u32 %v544, 3
    %vm546 = vcmp.lt.s32.totalorder %v545, 2
    %vm547 = vcmp.eq.s32.totalorder %v545, 0
    %v548 = vxor.u32 %v542, 2147483648
    %v549 = vsel %vm547, %v541, %v548
    %vm550 = vcmp.eq.s32.totalorder %v545, 2
    %v551 = vxor.u32 %v541, 2147483648
    %v552 = vsel %vm550, %v551, %v542
    %v553 = vsel %vm546, %v549, %v552
    %v554 = vsel %vm543, nan, %v553
    %s555 = scalar_lea.vmem [#allocation5], 20
    %556 = vst.msk [vmem:[%s555] sm:$0xf] %vm25, %v554
    %v557 = vand.u32 2147483647, %v450
    %vm558 = vcmp.le.f32.partialorder %v557, 0.7853982
    %vm559 = vcmp.lt.s32.totalorder %v450, 0
    %v560 = vand.u32 %v450, 2139095040
    %v561 = vshrl.u32 %v560, 23
    %v562 = vsub.s32 %v561, 127
    %v563 = vand.u32 2147483647, %v450
    %v564 = vand.u32 %v563, 8388607
    %v565 = vor.u32 %v564, 8388608
    %v566 = vsub.s32 0, %v565
    %v567 = vadd.s32 %v562, 1
    %vm568 = vcmp.gt.s32.totalorder %v567, 0
    %v569 = vsel %vm568, %v567, 0
    %v570 = vshrl.u32 %v569, 5
    %v571 = vand.u32 %v569, 31
    %v572 = vsub.s32 32, %v571
    %v573 = vshrl.u32 683565275, %v572
    %v574 = vshll.u32 683565275, %v571
    %v575 = vshrl.u32 2475754826, %v572
    %v576 = vor.u32 %v574, %v575
    %v577 = vshll.u32 2475754826, %v571
    %v578 = vshrl.u32 2131351028, %v572
    %v579 = vor.u32 %v577, %v578
    %v580 = vshll.u32 2131351028, %v571
    %v581 = vshrl.u32 2102212464, %v572
    %v582 = vor.u32 %v580, %v581
    %v583 = vshll.u32 2102212464, %v571
    %v584 = vshrl.u32 920167782, %v572
    %v585 = vor.u32 %v583, %v584
    %v586 = vshll.u32 920167782, %v571
    %v587 = vshrl.u32 1326507024, %v572
    %v588 = vor.u32 %v586, %v587
    %vm589 = vcmp.lt.s32.totalorder %v570, 1
    %vm590 = vcmp.lt.s32.totalorder %v570, 2
    %vm591 = vcmp.lt.s32.totalorder %v570, 3
    %vm592 = vcmp.lt.s32.totalorder %v570, 4
    %v593 = vsel %vm589, %v573, %v576
    %v594 = vsel %vm592, %v582, 2102212464
    %v595 = vsel %vm591, %v579, %v594
    %v596 = vsel %vm590, %v593, %v595
    %v597 = vsel %vm589, %v576, %v579
    %v598 = vsel %vm592, %v585, 920167782
    %v599 = vsel %vm591, %v582, %v598
    %v600 = vsel %vm590, %v597, %v599
    %v601 = vsel %vm589, %v579, %v582
    %v602 = vsel %vm592, %v588, 1326507024
    %v603 = vsel %vm591, %v585, %v602
    %v604 = vsel %vm590, %v601, %v603
    %v605 = vshll.u32 %v565, 8
    %v606 = vmul.u32.u64.compose %v605, %v604
    %v607 = vextract.low.u32 %v606
    %v608 = vextract.high.u32 %v606
    %v609 = vmul.u32.u64.compose %v605, %v600
    %v610 = vextract.low.u32 %v609
    %v611 = vextract.high.u32 %v609
    %v612 = vmul.u32 %v605, %v596
    %v613 = vadd.s32 %v608, %v610
    %vm614 = vc.u32 %v608, %v610
    %v615 = vadd.s32 %v611, 1
    %v616 = vsel %vm614, %v615, %v611
    %v617 = vadd.s32 %v612, %v616
    %v618 = vadd.s32 %v617, 536870912
    %v619 = vshrl.u32 %v618, 30
    %v620 = vshll.u32 %v619, 30
    %v621 = vsub.s32 %v617, %v620
    %vm622 = vcmp.lt.s32.totalorder %v621, 0
    %v623 = vsub.s32 0, %v621
    %v624 = vsel %vm622, %v623, %v621
    %v625 = vclz %v624
    %v626 = vsub.s32 %v625, 2
    %vm627 = vcmp.gt.s32.totalorder 0, %v626
    %v628 = vsel %vm627, 0, %v626
    %v629 = vsub.s32 32, %v628
    %v630 = vshll.u32 %v621, %v628
    %v631 = vshrl.u32 %v613, %v629
    %v632 = vor.u32 %v630, %v631
    %v633 = vsub.s32 4294967266, %v628
    %v634 = vadd.s32 %v633, 127
    %v635 = vshll.u32 %v634, 23
    %v636 = vor.u32 4788187, %v635
    %v637 = vand.u32 2147483647, %v636
    %v639 = vcvt.s32.f32 %v632
    %v640 = vmul.f32 %v639, %v637
    %v641 = vxor.u32 %v640, 2147483648
    %v642 = vsel %vm559, %v641, %v640
    %v643 = vsub.s32 4, %v619
    %v644 = vsel %vm559, %v643, %v619
    %v645 = vsel %vm558, %v450, %v642
    %v646 = vsel %vm558, 0, %v644
    %v647 = vcosq.f32.pop %v645
    %v648 = vsinq.f32.pop %v645
    %vm649 = vweird.f32 %v450
    %v650 = vand.u32 %v646, 3
    %vm651 = vcmp.lt.s32.totalorder %v650, 2
    %vm652 = vcmp.eq.s32.totalorder %v650, 0
    %v653 = vxor.u32 %v648, 2147483648
    %v654 = vsel %vm652, %v647, %v653
    %vm655 = vcmp.eq.s32.totalorder %v650, 2
    %v656 = vxor.u32 %v647, 2147483648
    %v657 = vsel %vm655, %v656, %v648
    %v658 = vsel %vm651, %v654, %v657
    %v659 = vsel %vm649, nan, %v658
    %s660 = scalar_lea.vmem [#allocation5], 24
    %661 = vst.msk [vmem:[%s660] sm:$0xf] %vm25, %v659
    %v662 = vmul.f32 %v21, 8.0
    %v663 = vand.u32 2147483647, %v662
    %vm664 = vcmp.le.f32.partialorder %v663, 0.7853982
    %vm665 = vcmp.lt.s32.totalorder %v662, 0
    %v666 = vand.u32 %v662, 2139095040
    %v667 = vshrl.u32 %v666, 23
    %v668 = vsub.s32 %v667, 127
    %v669 = vand.u32 2147483647, %v662
    %v670 = vand.u32 %v669, 8388607
    %v671 = vor.u32 %v670, 8388608
    %v672 = vsub.s32 0, %v671
    %v673 = vadd.s32 %v668, 1
    %vm674 = vcmp.gt.s32.totalorder %v673, 0
    %v675 = vsel %vm674, %v673, 0
    %v676 = vshrl.u32 %v675, 5
    %v677 = vand.u32 %v675, 31
    %v678 = vsub.s32 32, %v677
    %v679 = vshrl.u32 683565275, %v678
    %v680 = vshll.u32 683565275, %v677
    %v681 = vshrl.u32 2475754826, %v678
    %v682 = vor.u32 %v680, %v681
    %v683 = vshll.u32 2475754826, %v677
    %v684 = vshrl.u32 2131351028, %v678
    %v685 = vor.u32 %v683, %v684
    %v686 = vshll.u32 2131351028, %v677
    %v687 = vshrl.u32 2102212464, %v678
    %v688 = vor.u32 %v686, %v687
    %v689 = vshll.u32 2102212464, %v677
    %v690 = vshrl.u32 920167782, %v678
    %v691 = vor.u32 %v689, %v690
    %v692 = vshll.u32 920167782, %v677
    %v693 = vshrl.u32 1326507024, %v678
    %v694 = vor.u32 %v692, %v693
    %vm695 = vcmp.lt.s32.totalorder %v676, 1
    %vm696 = vcmp.lt.s32.totalorder %v676, 2
    %vm697 = vcmp.lt.s32.totalorder %v676, 3
    %vm698 = vcmp.lt.s32.totalorder %v676, 4
    %v699 = vsel %vm695, %v679, %v682
    %v700 = vsel %vm698, %v688, 2102212464
    %v701 = vsel %vm697, %v685, %v700
    %v702 = vsel %vm696, %v699, %v701
    %v703 = vsel %vm695, %v682, %v685
    %v704 = vsel %vm698, %v691, 920167782
    %v705 = vsel %vm697, %v688, %v704
    %v706 = vsel %vm696, %v703, %v705
    %v707 = vsel %vm695, %v685, %v688
    %v708 = vsel %vm698, %v694, 1326507024
    %v709 = vsel %vm697, %v691, %v708
    %v710 = vsel %vm696, %v707, %v709
    %v711 = vshll.u32 %v671, 8
    %v712 = vmul.u32.u64.compose %v711, %v710
    %v713 = vextract.low.u32 %v712
    %v714 = vextract.high.u32 %v712
    %v715 = vmul.u32.u64.compose %v711, %v706
    %v716 = vextract.low.u32 %v715
    %v717 = vextract.high.u32 %v715
    %v718 = vmul.u32 %v711, %v702
    %v719 = vadd.s32 %v714, %v716
    %vm720 = vc.u32 %v714, %v716
    %v721 = vadd.s32 %v717, 1
    %v722 = vsel %vm720, %v721, %v717
    %v723 = vadd.s32 %v718, %v722
    %v724 = vadd.s32 %v723, 536870912
    %v725 = vshrl.u32 %v724, 30
    %v726 = vshll.u32 %v725, 30
    %v727 = vsub.s32 %v723, %v726
    %vm728 = vcmp.lt.s32.totalorder %v727, 0
    %v729 = vsub.s32 0, %v727
    %v730 = vsel %vm728, %v729, %v727
    %v731 = vclz %v730
    %v732 = vsub.s32 %v731, 2
    %vm733 = vcmp.gt.s32.totalorder 0, %v732
    %v734 = vsel %vm733, 0, %v732
    %v735 = vsub.s32 32, %v734
    %v736 = vshll.u32 %v727, %v734
    %v737 = vshrl.u32 %v719, %v735
    %v738 = vor.u32 %v736, %v737
    %v739 = vsub.s32 4294967266, %v734
    %v740 = vadd.s32 %v739, 127
    %v741 = vshll.u32 %v740, 23
    %v742 = vor.u32 4788187, %v741
    %v743 = vand.u32 2147483647, %v742
    %v745 = vcvt.s32.f32 %v738
    %v746 = vmul.f32 %v745, %v743
    %v747 = vxor.u32 %v746, 2147483648
    %v748 = vsel %vm665, %v747, %v746
    %v749 = vsub.s32 4, %v725
    %v750 = vsel %vm665, %v749, %v725
    %v751 = vsel %vm664, %v662, %v748
    %v752 = vsel %vm664, 0, %v750
    %v753 = vcosq.f32.pop %v751
    %v754 = vsinq.f32.pop %v751
    %vm755 = vweird.f32 %v662
    %v756 = vadd.s32 %v752, 3
    %v757 = vand.u32 %v756, 3
    %vm758 = vcmp.lt.s32.totalorder %v757, 2
    %vm759 = vcmp.eq.s32.totalorder %v757, 0
    %v760 = vxor.u32 %v754, 2147483648
    %v761 = vsel %vm759, %v753, %v760
    %vm762 = vcmp.eq.s32.totalorder %v757, 2
    %v763 = vxor.u32 %v753, 2147483648
    %v764 = vsel %vm762, %v763, %v754
    %v765 = vsel %vm758, %v761, %v764
    %v766 = vsel %vm755, nan, %v765
    %s767 = scalar_lea.vmem [#allocation5], 28
    %768 = vst.msk [vmem:[%s767] sm:$0xf] %vm25, %v766
    %v769 = vand.u32 2147483647, %v662
    %vm770 = vcmp.le.f32.partialorder %v769, 0.7853982
    %vm771 = vcmp.lt.s32.totalorder %v662, 0
    %v772 = vand.u32 %v662, 2139095040
    %v773 = vshrl.u32 %v772, 23
    %v774 = vsub.s32 %v773, 127
    %v775 = vand.u32 2147483647, %v662
    %v776 = vand.u32 %v775, 8388607
    %v777 = vor.u32 %v776, 8388608
    %v778 = vsub.s32 0, %v777
    %v779 = vadd.s32 %v774, 1
    %vm780 = vcmp.gt.s32.totalorder %v779, 0
    %v781 = vsel %vm780, %v779, 0
    %v782 = vshrl.u32 %v781, 5
    %v783 = vand.u32 %v781, 31
    %v784 = vsub.s32 32, %v783
    %v785 = vshrl.u32 683565275, %v784
    %v786 = vshll.u32 683565275, %v783
    %v787 = vshrl.u32 2475754826, %v784
    %v788 = vor.u32 %v786, %v787
    %v789 = vshll.u32 2475754826, %v783
    %v790 = vshrl.u32 2131351028, %v784
    %v791 = vor.u32 %v789, %v790
    %v792 = vshll.u32 2131351028, %v783
    %v793 = vshrl.u32 2102212464, %v784
    %v794 = vor.u32 %v792, %v793
    %v795 = vshll.u32 2102212464, %v783
    %v796 = vshrl.u32 920167782, %v784
    %v797 = vor.u32 %v795, %v796
    %v798 = vshll.u32 920167782, %v783
    %v799 = vshrl.u32 1326507024, %v784
    %v800 = vor.u32 %v798, %v799
    %vm801 = vcmp.lt.s32.totalorder %v782, 1
    %vm802 = vcmp.lt.s32.totalorder %v782, 2
    %vm803 = vcmp.lt.s32.totalorder %v782, 3
    %vm804 = vcmp.lt.s32.totalorder %v782, 4
    %v805 = vsel %vm801, %v785, %v788
    %v806 = vsel %vm804, %v794, 2102212464
    %v807 = vsel %vm803, %v791, %v806
    %v808 = vsel %vm802, %v805, %v807
    %v809 = vsel %vm801, %v788, %v791
    %v810 = vsel %vm804, %v797, 920167782
    %v811 = vsel %vm803, %v794, %v810
    %v812 = vsel %vm802, %v809, %v811
    %v813 = vsel %vm801, %v791, %v794
    %v814 = vsel %vm804, %v800, 1326507024
    %v815 = vsel %vm803, %v797, %v814
    %v816 = vsel %vm802, %v813, %v815
    %v817 = vshll.u32 %v777, 8
    %v818 = vmul.u32.u64.compose %v817, %v816
    %v819 = vextract.low.u32 %v818
    %v820 = vextract.high.u32 %v818
    %v821 = vmul.u32.u64.compose %v817, %v812
    %v822 = vextract.low.u32 %v821
    %v823 = vextract.high.u32 %v821
    %v824 = vmul.u32 %v817, %v808
    %v825 = vadd.s32 %v820, %v822
    %vm826 = vc.u32 %v820, %v822
    %v827 = vadd.s32 %v823, 1
    %v828 = vsel %vm826, %v827, %v823
    %v829 = vadd.s32 %v824, %v828
    %v830 = vadd.s32 %v829, 536870912
    %v831 = vshrl.u32 %v830, 30
    %v832 = vshll.u32 %v831, 30
    %v833 = vsub.s32 %v829, %v832
    %vm834 = vcmp.lt.s32.totalorder %v833, 0
    %v835 = vsub.s32 0, %v833
    %v836 = vsel %vm834, %v835, %v833
    %v837 = vclz %v836
    %v838 = vsub.s32 %v837, 2
    %vm839 = vcmp.gt.s32.totalorder 0, %v838
    %v840 = vsel %vm839, 0, %v838
    %v841 = vsub.s32 32, %v840
    %v842 = vshll.u32 %v833, %v840
    %v843 = vshrl.u32 %v825, %v841
    %v844 = vor.u32 %v842, %v843
    %v845 = vsub.s32 4294967266, %v840
    %v846 = vadd.s32 %v845, 127
    %v847 = vshll.u32 %v846, 23
    %v848 = vor.u32 4788187, %v847
    %v849 = vand.u32 2147483647, %v848
    %v851 = vcvt.s32.f32 %v844
    %v852 = vmul.f32 %v851, %v849
    %v853 = vxor.u32 %v852, 2147483648
    %v854 = vsel %vm771, %v853, %v852
    %v855 = vsub.s32 4, %v831
    %v856 = vsel %vm771, %v855, %v831
    %v857 = vsel %vm770, %v662, %v854
    %v858 = vsel %vm770, 0, %v856
    %v859 = vcosq.f32.pop %v857
    %v860 = vsinq.f32.pop %v857
    %vm861 = vweird.f32 %v662
    %v862 = vand.u32 %v858, 3
    %vm863 = vcmp.lt.s32.totalorder %v862, 2
    %vm864 = vcmp.eq.s32.totalorder %v862, 0
    %v865 = vxor.u32 %v860, 2147483648
    %v866 = vsel %vm864, %v859, %v865
    %vm867 = vcmp.eq.s32.totalorder %v862, 2
    %v868 = vxor.u32 %v859, 2147483648
    %v869 = vsel %vm867, %v868, %v860
    %v870 = vsel %vm863, %v866, %v869
    %v871 = vsel %vm861, nan, %v870
    %s872 = scalar_lea.vmem [#allocation5], 32
    %873 = vst.msk [vmem:[%s872] sm:$0xf] %vm25, %v871
    // Predicated region
    $region10: #{tpu_custom_call.1} parent=1 // pred_check
      _
    $region11: #{tpu_custom_call.1} parent=1 // pred_check_branch
      %875 = sbr.rel (0) target = $region13
    $region12: #{tpu_custom_call.1} parent=1 // pred_region
      %s877 = ssub.s32 576, 576
      %878 = vsyncadd [#allocation4], %s877
      %s879 = sshll.u32 [#allocation5], 4
      %s880 = int_to_ptr.vmem [resolvable:$true] %s879
      %885 = dma.vmem_to_hbm [thread:$0]  %s880, 576, %s1, [#allocation4], 64, 64, 4
    $region13: #{tpu_custom_call.1} parent=1 // pred_fallthru
      _
    // Predicated region
    $region14: #{tpu_custom_call.1} parent=1 // pred_check
      _
    $region15: #{tpu_custom_call.1} parent=1 // pred_check_branch
      %887 = sbr.rel (0) target = $region17
    $region16: #{tpu_custom_call.1} parent=1 // pred_region
      %888 = dma.done [#allocation4], 576
    $region17: #{tpu_custom_call.1} parent=1 // pred_fallthru
      _
    %889 = vsyncpa [#allocation3], 1
    %890 = vsyncpa [#allocation4], 1

</llo_original>
